<compile_context>
chip_gen: v5e
topology: v5e:2x2
jax: 0.10.0
libtpu: 0.0.40
codegen_flags: <defaults>
</compile_context>

<pallas_src>
import functools
import math

import jax
import jax.numpy as jnp
from jax.experimental import pallas as pl
from jax.experimental.pallas import tpu as pltpu

LANES = 128
MAX_TILE_ROWS = 2048  # (2048, 128) f32 tile = 1 MiB; 2 arrays x 2 buffers = 4 MiB VMEM


def _lowbias32(x):
    """Well-mixed 32-bit integer hash (uint32 -> uint32)."""
    x = x ^ (x >> 16)
    x = x * jnp.uint32(0x7FEB352D)
    x = x ^ (x >> 15)
    x = x * jnp.uint32(0x846CA68B)
    x = x ^ (x >> 16)
    return x


def _noise_kernel(seed_ref, x_ref, o_ref, *, noise_level):
    tile_rows, lanes = x_ref.shape
    i = pl.program_id(0)

    # Grid-invariant global element index of every element in this tile
    # (noise depends only on (seed, element index), not on tile size / grid).
    row = jax.lax.broadcasted_iota(jnp.int32, (tile_rows, lanes), 0)
    lane = jax.lax.broadcasted_iota(jnp.int32, (tile_rows, lanes), 1)
    g_row = (row + i * tile_rows).astype(jnp.uint32)
    idx = g_row * jnp.uint32(lanes) + lane.astype(jnp.uint32)

    # Two decorrelated counter streams per element, mixed with the seed.
    seed_mix = (seed_ref[0].astype(jnp.uint32) * jnp.uint32(0x9E3779B9)
                + jnp.uint32(0x7F4A7C15))
    c = idx * jnp.uint32(2)
    b1 = _lowbias32(c ^ seed_mix)
    b2 = _lowbias32((c + jnp.uint32(1)) ^ seed_mix)

    # Top 24 bits -> uniforms in (0, 1] / [0, 1), then Box-Muller -> N(0, 1).
    scale24 = jnp.float32(1.0 / (1 << 24))
    u1 = ((b1 >> 8).astype(jnp.int32).astype(jnp.float32) + 1.0) * scale24
    u2 = (b2 >> 8).astype(jnp.int32).astype(jnp.float32) * scale24
    r = jnp.sqrt(jnp.float32(-2.0) * jnp.log(u1)) * jnp.float32(noise_level)
    noise = r * jnp.cos(jnp.float32(2.0 * math.pi) * u2)

    y = x_ref[...].astype(jnp.float32) + noise
    o_ref[...] = y.astype(o_ref.dtype)


def noise_injection(x, seed, noise_level=0.1, training=True):
    """JAX/Pallas equivalent of NoiseInjection.forward."""
    if not training:
        return x

    orig_shape = x.shape
    orig_dtype = x.dtype
    n = x.size

    rows_needed = pl.cdiv(n, LANES)
    if rows_needed <= MAX_TILE_ROWS:
        tile_rows = max(int(rows_needed), 1)   # single block == full array dims
    else:
        tile_rows = MAX_TILE_ROWS              # multiple of 8 -> valid block shape
    grid_rows = pl.cdiv(rows_needed, tile_rows)
    rows = grid_rows * tile_rows
    n_pad = rows * LANES

    flat = x.reshape(-1)
    if n_pad != n:
        # Ragged tail only: pad so the (rows, 128) view tiles cleanly.
        flat = jnp.pad(flat, (0, n_pad - n))
    x2 = flat.reshape(rows, LANES)

    seed_arr = jnp.asarray([seed], dtype=jnp.int32)

    n_elems = rows * LANES
    cost = pl.CostEstimate(
        flops=30 * n_elems,                                  # hash + Box-Muller + FMA
        transcendentals=3 * n_elems,                         # log, sqrt, cos
        bytes_accessed=2 * n_elems * x2.dtype.itemsize,      # one read + one write
    )

    out2 = pl.pallas_call(
        functools.partial(_noise_kernel, noise_level=float(noise_level)),
        out_shape=jax.ShapeDtypeStruct((rows, LANES), orig_dtype),
        grid_spec=pltpu.PrefetchScalarGridSpec(
            num_scalar_prefetch=1,
            grid=(int(grid_rows),),
            in_specs=[pl.BlockSpec((tile_rows, LANES), lambda i, seed: (i, 0))],
            out_specs=pl.BlockSpec((tile_rows, LANES), lambda i, seed: (i, 0)),
        ),
        compiler_params=pltpu.CompilerParams(
            dimension_semantics=("parallel",),   # independent tiles -> megacore OK
        ),
        cost_estimate=cost,
    )(seed_arr, x2)

    out = out2.reshape(-1)
    if n_pad != n:
        out = out[:n]
    return out.reshape(orig_shape)


if __name__ == "__main__":
    key = jax.random.PRNGKey(0)
    x = jax.random.normal(key, (2, 4, 16, 16), dtype=jnp.float32)  # NCHW

    # Training-mode forward (noise generated in-kernel).
    y_train = noise_injection(x, seed=0, noise_level=0.1, training=True)
    y_train = jax.block_until_ready(y_train)
    assert y_train.shape == x.shape and y_train.dtype == x.dtype

    noise = y_train - x
    assert float(jnp.max(jnp.abs(noise))) > 0.0
    std = float(jnp.std(noise))
    mean = float(jnp.mean(noise))
    assert 0.03 < std < 0.3, f"noise std {std} not ~0.1"
    assert abs(mean) < 0.05, f"noise mean {mean} not ~0"

    # Eval-mode forward is identity (matches PyTorch `if self.training` branch).
    y_eval = noise_injection(x, seed=0, noise_level=0.1, training=False)
    y_eval = jax.block_until_ready(y_eval)
    assert bool(jnp.all(y_eval == x))

    print("KERNEL_OK")
</pallas_src>

<mosaic_0001>
module attributes {stable_mosaic.version = 11 : i64} {
  func.func @_noise_kernel(%arg0: i32, %arg1: memref<1xi32, #tpu.memory_space<smem>>, %arg2: memref<16x128xf32, #tpu.memory_space<vmem>>, %arg3: memref<16x128xf32, #tpu.memory_space<vmem>>) attributes {dimension_semantics = [#tpu.dimension_semantics<parallel>], iteration_bounds = array<i64: 1>, scalar_prefetch = 1 : i64, scratch_operands = 0 : i64, tpu.core_type = #tpu.core_type<tc>, window_params = [{transform_indices = @transform_0, window_bounds = array<i64: 16, 128>}, {transform_indices = @transform_1, window_bounds = array<i64: 16, 128>}]} {
    %0 = tpu.iota {dimensions = array<i32: 0>} : vector<16x128xi32>
    %1 = tpu.iota {dimensions = array<i32: 1>} : vector<16x128xi32>
    %c16_i32 = arith.constant 16 : i32
    %2 = arith.muli %arg0, %c16_i32 : i32
    %3 = vector.broadcast %2 : i32 to vector<16x128xi32>
    %4 = arith.addi %0, %3 : vector<16x128xi32>
    %c128_i32 = arith.constant 128 : i32
    %5 = vector.broadcast %c128_i32 : i32 to vector<16x128xi32>
    %6 = arith.muli %4, %5 : vector<16x128xi32>
    %7 = arith.addi %6, %1 : vector<16x128xi32>
    %c0 = arith.constant 0 : index
    %8 = memref.load %arg1[%c0] : memref<1xi32, #tpu.memory_space<smem>>
    %c-1640531527_i32 = arith.constant -1640531527 : i32
    %9 = arith.muli %8, %c-1640531527_i32 : i32
    %c2135587861_i32 = arith.constant 2135587861 : i32
    %10 = arith.addi %9, %c2135587861_i32 : i32
    %c2_i32 = arith.constant 2 : i32
    %11 = vector.broadcast %c2_i32 : i32 to vector<16x128xi32>
    %12 = arith.muli %7, %11 : vector<16x128xi32>
    %13 = vector.broadcast %10 : i32 to vector<16x128xi32>
    %14 = arith.xori %12, %13 : vector<16x128xi32>
    %c16_i32_0 = arith.constant 16 : i32
    %15 = vector.broadcast %c16_i32_0 : i32 to vector<16x128xi32>
    %16 = arith.shrui %14, %15 : vector<16x128xi32>
    %17 = arith.xori %14, %16 : vector<16x128xi32>
    %c2146121005_i32 = arith.constant 2146121005 : i32
    %18 = vector.broadcast %c2146121005_i32 : i32 to vector<16x128xi32>
    %19 = arith.muli %17, %18 : vector<16x128xi32>
    %c15_i32 = arith.constant 15 : i32
    %20 = vector.broadcast %c15_i32 : i32 to vector<16x128xi32>
    %21 = arith.shrui %19, %20 : vector<16x128xi32>
    %22 = arith.xori %19, %21 : vector<16x128xi32>
    %c-2073254261_i32 = arith.constant -2073254261 : i32
    %23 = vector.broadcast %c-2073254261_i32 : i32 to vector<16x128xi32>
    %24 = arith.muli %22, %23 : vector<16x128xi32>
    %c16_i32_1 = arith.constant 16 : i32
    %25 = vector.broadcast %c16_i32_1 : i32 to vector<16x128xi32>
    %26 = arith.shrui %24, %25 : vector<16x128xi32>
    %27 = arith.xori %24, %26 : vector<16x128xi32>
    %c1_i32 = arith.constant 1 : i32
    %28 = vector.broadcast %c1_i32 : i32 to vector<16x128xi32>
    %29 = arith.addi %12, %28 : vector<16x128xi32>
    %30 = vector.broadcast %10 : i32 to vector<16x128xi32>
    %31 = arith.xori %29, %30 : vector<16x128xi32>
    %c16_i32_2 = arith.constant 16 : i32
    %32 = vector.broadcast %c16_i32_2 : i32 to vector<16x128xi32>
    %33 = arith.shrui %31, %32 : vector<16x128xi32>
    %34 = arith.xori %31, %33 : vector<16x128xi32>
    %c2146121005_i32_3 = arith.constant 2146121005 : i32
    %35 = vector.broadcast %c2146121005_i32_3 : i32 to vector<16x128xi32>
    %36 = arith.muli %34, %35 : vector<16x128xi32>
    %c15_i32_4 = arith.constant 15 : i32
    %37 = vector.broadcast %c15_i32_4 : i32 to vector<16x128xi32>
    %38 = arith.shrui %36, %37 : vector<16x128xi32>
    %39 = arith.xori %36, %38 : vector<16x128xi32>
    %c-2073254261_i32_5 = arith.constant -2073254261 : i32
    %40 = vector.broadcast %c-2073254261_i32_5 : i32 to vector<16x128xi32>
    %41 = arith.muli %39, %40 : vector<16x128xi32>
    %c16_i32_6 = arith.constant 16 : i32
    %42 = vector.broadcast %c16_i32_6 : i32 to vector<16x128xi32>
    %43 = arith.shrui %41, %42 : vector<16x128xi32>
    %44 = arith.xori %41, %43 : vector<16x128xi32>
    %c8_i32 = arith.constant 8 : i32
    %45 = vector.broadcast %c8_i32 : i32 to vector<16x128xi32>
    %46 = arith.shrui %27, %45 : vector<16x128xi32>
    %47 = arith.sitofp %46 : vector<16x128xi32> to vector<16x128xf32>
    %cst = arith.constant 1.000000e+00 : f32
    %48 = vector.broadcast %cst : f32 to vector<16x128xf32>
    %49 = arith.addf %47, %48 : vector<16x128xf32>
    %cst_7 = arith.constant 5.96046448E-8 : f32
    %50 = vector.broadcast %cst_7 : f32 to vector<16x128xf32>
    %51 = arith.mulf %49, %50 : vector<16x128xf32>
    %c8_i32_8 = arith.constant 8 : i32
    %52 = vector.broadcast %c8_i32_8 : i32 to vector<16x128xi32>
    %53 = arith.shrui %44, %52 : vector<16x128xi32>
    %54 = arith.sitofp %53 : vector<16x128xi32> to vector<16x128xf32>
    %cst_9 = arith.constant 5.96046448E-8 : f32
    %55 = vector.broadcast %cst_9 : f32 to vector<16x128xf32>
    %56 = arith.mulf %54, %55 : vector<16x128xf32>
    %57 = math.log %51 : vector<16x128xf32>
    %cst_10 = arith.constant -2.000000e+00 : f32
    %58 = vector.broadcast %cst_10 : f32 to vector<16x128xf32>
    %59 = arith.mulf %58, %57 : vector<16x128xf32>
    %60 = math.sqrt %59 : vector<16x128xf32>
    %cst_11 = arith.constant 1.000000e-01 : f32
    %61 = vector.broadcast %cst_11 : f32 to vector<16x128xf32>
    %62 = arith.mulf %60, %61 : vector<16x128xf32>
    %cst_12 = arith.constant 6.28318548 : f32
    %63 = vector.broadcast %cst_12 : f32 to vector<16x128xf32>
    %64 = arith.mulf %63, %56 : vector<16x128xf32>
    %65 = math.cos %64 : vector<16x128xf32>
    %66 = arith.mulf %62, %65 : vector<16x128xf32>
    %c0_13 = arith.constant 0 : index
    %c0_14 = arith.constant 0 : index
    %67 = vector.load %arg2[%c0_13, %c0_14] : memref<16x128xf32, #tpu.memory_space<vmem>>, vector<16x128xf32>
    %68 = arith.addf %67, %66 : vector<16x128xf32>
    %c0_15 = arith.constant 0 : index
    %c0_16 = arith.constant 0 : index
    %69 = vector.load %arg3[%c0_15, %c0_16] : memref<16x128xf32, #tpu.memory_space<vmem>>, vector<16x128xf32>
    tpu.vector_store %arg3[%c0_15, %c0_16], %68 {strides = array<i32>} : memref<16x128xf32, #tpu.memory_space<vmem>>, vector<16x128xf32>,
    return
  }
  func.func @transform_0(%arg0: i32, %arg1: memref<1xi32, #tpu.memory_space<smem>>) -> (i32, i32) {
    %c0_i32 = arith.constant 0 : i32
    %c0_i32_0 = arith.constant 0 : i32
    return %arg0, %c0_i32 : i32, i32
  }
  func.func @transform_1(%arg0: i32, %arg1: memref<1xi32, #tpu.memory_space<smem>>) -> (i32, i32) {
    %c0_i32 = arith.constant 0 : i32
    %c0_i32_0 = arith.constant 0 : i32
    return %arg0, %c0_i32 : i32, i32
  }
}

</mosaic_0001>

<llo_original>
// kernel: tpu_custom_call.1
$region0: #{tpu_custom_call.1}
  #allocation0 [shape = 'u32[]', space=smem, size = 0x4, offset = 0x4, fixed_abs, tag = 'smem constant byte address 0x4 - core index']
  #allocation1 [shape = 'u32[72,128]{1,0:T(1,128)}', space=vmem, size = 0x9000, scoped, tag = 'internal scratch']
  #allocation2 [shape = 's32[1]{0}', space=sflag, size = 0x4, scoped, tag = 'scoped memory for tpu_custom_call.1']
  #allocation3 [shape = 's32[1]{0:T(128)S(6)}', space=smem, size = 0x200, scoped, tag = 'prefetched SMEM operand 0']
  %s0 = inlined_call_operand.<no memory space> [shape: s32[1], index: 0, kind: input, shape index: {}]
  %s1 = inlined_call_operand.hbm [shape: f32[16,128], index: 1, kind: input, shape index: {}]
  %s2 = inlined_call_operand.hbm [shape: f32[16,128], index: 2, kind: output, shape index: {}]
  %s3 = sld [smem:[#allocation0]]
  $region18: #{tpu_custom_call.1} parent=0
    _
  %s5 = ssub.s32 1, %s3
  %s6 = scalar_select 0, %s5, %s3
  %7 = sst [smem:[#allocation3]] %s0
  $region1: #{tpu_custom_call.1} parent=0
    #allocation4 [shape = 'u8[8192]{0}', space=vmem, size = 0x2000, scoped, tag = 'input window, operand 1, single buffered']
    #allocation5 [shape = 's32[1]{0}', space=sflag, size = 0x4, scoped, tag = 'scoped memory for tpu_custom_call.1']
    #allocation6 [shape = 's32[1]{0}', space=sflag, size = 0x4, scoped, tag = 'scoped memory for tpu_custom_call.1']
    #allocation7 [shape = 'u8[8192]{0}', space=vmem, size = 0x2000, scoped, tag = 'output window, operand 0, single buffered']
    %8 = vsyncpa [#allocation5], 0
    %9 = vsyncpa [#allocation6], 0
    // Predicated region
    $region2: #{tpu_custom_call.1} parent=1 // pred_check
      _
    $region3: #{tpu_custom_call.1} parent=1 // pred_check_branch
      %11 = sbr.rel (0) target = $region5
    $region4: #{tpu_custom_call.1} parent=1 // pred_region
      %13 = vsyncadd [#allocation5], 0
      %s14 = sshll.u32 %s1, 4
      %s15 = int_to_ptr.hbm [resolvable:$true] %s14
      %s16 = sshll.u32 [#allocation4], 4
      %s17 = int_to_ptr.vmem [resolvable:$true] %s16
      %22 = dma.hbm_to_vmem [thread:$0]  %s15, 256, %s17, [#allocation5], 128, 128, 8
    $region5: #{tpu_custom_call.1} parent=1 // pred_fallthru
      _
    // Predicated region
    $region6: #{tpu_custom_call.1} parent=1 // pred_check
      _
    $region7: #{tpu_custom_call.1} parent=1 // pred_check_branch
      %24 = sbr.rel (0) target = $region9
    $region8: #{tpu_custom_call.1} parent=1 // pred_region
      %26 = dma.done [#allocation5], 256
    $region9: #{tpu_custom_call.1} parent=1 // pred_fallthru
      _
    %v27 = vlaneseq
    %v28 = vshrl.u32 %v27, 7
    %v29 = vadd.s32 %v28, 8
    %v30 = vlaneseq
    %v31 = vand.u32 %v30, 127
    %s32 = smul.u32 0, 16
    %v33 = vstv %s32
    %v34 = vadd.s32 %v28, %v33
    %v35 = vadd.s32 %v29, %v33
    %v36 = vmul.u32 %v34, 128
    %v37 = vmul.u32 %v35, 128
    %v38 = vadd.s32 %v36, %v31
    %v39 = vadd.s32 %v37, %v31
    %s40 = sld [smem:[#allocation3]]
    %s41 = smul.u32 %s40, 2654435769
    %s42 = sadd.s32 %s41, 2135587861
    %v43 = vmul.u32 %v38, 2
    %v44 = vmul.u32 %v39, 2
    %v45 = vstv %s42
    %v46 = vxor.u32 %v43, %v45
    %v47 = vxor.u32 %v44, %v45
    %v48 = vshrl.u32 %v46, 16
    %v49 = vshrl.u32 %v47, 16
    %v50 = vxor.u32 %v46, %v48
    %v51 = vxor.u32 %v47, %v49
    %v52 = vmul.u32 %v50, 2146121005
    %v53 = vmul.u32 %v51, 2146121005
    %v54 = vshrl.u32 %v52, 15
    %v55 = vshrl.u32 %v53, 15
    %v56 = vxor.u32 %v52, %v54
    %v57 = vxor.u32 %v53, %v55
    %v58 = vmul.u32 %v56, 2221713035
    %v59 = vmul.u32 %v57, 2221713035
    %v60 = vshrl.u32 %v58, 16
    %v61 = vshrl.u32 %v59, 16
    %v62 = vxor.u32 %v58, %v60
    %v63 = vxor.u32 %v59, %v61
    %v64 = vadd.s32 %v43, 1
    %v65 = vadd.s32 %v44, 1
    %v66 = vxor.u32 %v64, %v45
    %v67 = vxor.u32 %v65, %v45
    %v68 = vshrl.u32 %v66, 16
    %v69 = vshrl.u32 %v67, 16
    %v70 = vxor.u32 %v66, %v68
    %v71 = vxor.u32 %v67, %v69
    %v72 = vmul.u32 %v70, 2146121005
    %v73 = vmul.u32 %v71, 2146121005
    %v74 = vshrl.u32 %v72, 15
    %v75 = vshrl.u32 %v73, 15
    %v76 = vxor.u32 %v72, %v74
    %v77 = vxor.u32 %v73, %v75
    %v78 = vmul.u32 %v76, 2221713035
    %v79 = vmul.u32 %v77, 2221713035
    %v80 = vshrl.u32 %v78, 16
    %v81 = vshrl.u32 %v79, 16
    %v82 = vxor.u32 %v78, %v80
    %v83 = vxor.u32 %v79, %v81
    %v84 = vshrl.u32 %v62, 8
    %v85 = vshrl.u32 %v63, 8
    %v86 = vcvt.s32.f32 %v84
    %v87 = vcvt.s32.f32 %v85
    %v88 = vadd.f32 %v86, 1.0
    %v89 = vadd.f32 %v87, 1.0
    %v90 = vmul.f32 %v88, 5.9604645e-08
    %v91 = vmul.f32 %v89, 5.9604645e-08
    %v92 = vshrl.u32 %v82, 8
    %v93 = vshrl.u32 %v83, 8
    %v94 = vcvt.s32.f32 %v92
    %v95 = vcvt.s32.f32 %v93
    %v96 = vmul.f32 %v94, 5.9604645e-08
    %v97 = vmul.f32 %v95, 5.9604645e-08
    %v98 = vlog2.pop %v90
    %v99 = vmul.f32 %v98, 0.6931472
    %v100 = vlog2.pop %v91
    %v101 = vmul.f32 %v100, 0.6931472
    %v102 = vmul.f32 %v99, -2.0
    %v103 = vmul.f32 %v101, -2.0
    %v104 = vrsqrt.pop %v102
    %v105 = vmul.f32 %v104, %v102
    %v106 = vmul.f32 %v105, %v104
    %v107 = vmul.f32 0.5, %v106
    %v108 = vsub.f32 1.5, %v107
    %v109 = vmul.f32 %v104, %v108
    %v110 = vmul.f32 %v102, %v109
    %vm111 = vcmp.eq.f32.partialorder %v102, inf
    %v112 = vsel %vm111, %v102, %v110
    %vm113 = vcmp.eq.f32.partialorder %v102, 0.0
    %v114 = vand.u32 %v102, 2147483648
    %v115 = vsel %vm113, %v114, %v112
    %v116 = vrsqrt.pop %v103
    %v117 = vmul.f32 %v116, %v103
    %v118 = vmul.f32 %v117, %v116
    %v119 = vmul.f32 0.5, %v118
    %v120 = vsub.f32 1.5, %v119
    %v121 = vmul.f32 %v116, %v120
    %v122 = vmul.f32 %v103, %v121
    %vm123 = vcmp.eq.f32.partialorder %v103, inf
    %v124 = vsel %vm123, %v103, %v122
    %vm125 = vcmp.eq.f32.partialorder %v103, 0.0
    %v126 = vand.u32 %v103, 2147483648
    %v127 = vsel %vm125, %v126, %v124
    %v128 = vmul.f32 %v115, 0.1
    %v129 = vmul.f32 %v127, 0.1
    %v130 = vmul.f32 %v96, 6.2831855
    %v131 = vmul.f32 %v97, 6.2831855
    %v132 = vand.u32 2147483647, %v130
    %vm133 = vcmp.le.f32.partialorder %v132, 0.7853982
    %vm134 = vcmp.lt.s32.totalorder %v130, 0
    %v135 = vand.u32 %v130, 2139095040
    %v136 = vshrl.u32 %v135, 23
    %v137 = vsub.s32 %v136, 127
    %v138 = vand.u32 2147483647, %v130
    %v139 = vand.u32 %v138, 8388607
    %v140 = vor.u32 %v139, 8388608
    %v141 = vsub.s32 0, %v140
    %v142 = vadd.s32 %v137, 1
    %vm143 = vcmp.gt.s32.totalorder %v142, 0
    %v144 = vsel %vm143, %v142, 0
    %v145 = vshrl.u32 %v144, 5
    %v146 = vand.u32 %v144, 31
    %v147 = vsub.s32 32, %v146
    %v148 = vshrl.u32 683565275, %v147
    %v149 = vshll.u32 683565275, %v146
    %v150 = vshrl.u32 2475754826, %v147
    %v151 = vor.u32 %v149, %v150
    %v152 = vshll.u32 2475754826, %v146
    %v153 = vshrl.u32 2131351028, %v147
    %v154 = vor.u32 %v152, %v153
    %v155 = vshll.u32 2131351028, %v146
    %v156 = vshrl.u32 2102212464, %v147
    %v157 = vor.u32 %v155, %v156
    %v158 = vshll.u32 2102212464, %v146
    %v159 = vshrl.u32 920167782, %v147
    %v160 = vor.u32 %v158, %v159
    %v161 = vshll.u32 920167782, %v146
    %v162 = vshrl.u32 1326507024, %v147
    %v163 = vor.u32 %v161, %v162
    %vm164 = vcmp.lt.s32.totalorder %v145, 1
    %vm165 = vcmp.lt.s32.totalorder %v145, 2
    %vm166 = vcmp.lt.s32.totalorder %v145, 3
    %vm167 = vcmp.lt.s32.totalorder %v145, 4
    %v168 = vsel %vm164, %v148, %v151
    %v169 = vsel %vm167, %v157, 2102212464
    %v170 = vsel %vm166, %v154, %v169
    %v171 = vsel %vm165, %v168, %v170
    %v172 = vsel %vm164, %v151, %v154
    %v173 = vsel %vm167, %v160, 920167782
    %v174 = vsel %vm166, %v157, %v173
    %v175 = vsel %vm165, %v172, %v174
    %v176 = vsel %vm164, %v154, %v157
    %v177 = vsel %vm167, %v163, 1326507024
    %v178 = vsel %vm166, %v160, %v177
    %v179 = vsel %vm165, %v176, %v178
    %v180 = vshll.u32 %v140, 8
    %v181 = vand.u32 %v180, 65535
    %v182 = vshrl.u32 %v180, 16
    %v183 = vand.u32 %v179, 65535
    %v184 = vshrl.u32 %v179, 16
    %v185 = vmul.u32 %v181, %v183
    %v186 = vmul.u32 %v181, %v184
    %v187 = vmul.u32 %v182, %v183
    %v188 = vmul.u32 %v182, %v184
    %v189 = vshll.u32 %v186, 16
    %v190 = vshrl.u32 %v186, 16
    %v191 = vshll.u32 %v187, 16
    %v192 = vshrl.u32 %v187, 16
    %vm193 = vc.u32 %v185, %v189
    %v194 = vsel %vm193, 1, 0
    %v195 = vadd.s32 %v185, %v189
    %v196 = vadd.s32 %v188, %v194
    %vm197 = vc.u32 %v195, %v191
    %v198 = vsel %vm197, 1, 0
    %v199 = vadd.s32 %v195, %v191
    %v200 = vadd.s32 %v196, %v198
    %v201 = vadd.s32 %v200, %v190
    %v202 = vadd.s32 %v201, %v192
    %v203 = vand.u32 %v180, 65535
    %v204 = vshrl.u32 %v180, 16
    %v205 = vand.u32 %v175, 65535
    %v206 = vshrl.u32 %v175, 16
    %v207 = vmul.u32 %v203, %v205
    %v208 = vmul.u32 %v203, %v206
    %v209 = vmul.u32 %v204, %v205
    %v210 = vmul.u32 %v204, %v206
    %v211 = vshll.u32 %v208, 16
    %v212 = vshrl.u32 %v208, 16
    %v213 = vshll.u32 %v209, 16
    %v214 = vshrl.u32 %v209, 16
    %vm215 = vc.u32 %v207, %v211
    %v216 = vsel %vm215, 1, 0
    %v217 = vadd.s32 %v207, %v211
    %v218 = vadd.s32 %v210, %v216
    %vm219 = vc.u32 %v217, %v213
    %v220 = vsel %vm219, 1, 0
    %v221 = vadd.s32 %v217, %v213
    %v222 = vadd.s32 %v218, %v220
    %v223 = vadd.s32 %v222, %v212
    %v224 = vadd.s32 %v223, %v214
    %v225 = vmul.u32 %v180, %v171
    %v226 = vadd.s32 %v202, %v221
    %vm227 = vc.u32 %v202, %v221
    %v228 = vadd.s32 %v224, 1
    %v229 = vsel %vm227, %v228, %v224
    %v230 = vadd.s32 %v225, %v229
    %v231 = vadd.s32 %v230, 536870912
    %v232 = vshrl.u32 %v231, 30
    %v233 = vshll.u32 %v232, 30
    %v234 = vsub.s32 %v230, %v233
    %vm235 = vcmp.lt.s32.totalorder %v234, 0
    %v236 = vsub.s32 0, %v234
    %v237 = vsel %vm235, %v236, %v234
    %v238 = vclz %v237
    %v239 = vsub.s32 %v238, 2
    %vm240 = vcmp.gt.s32.totalorder 0, %v239
    %v241 = vsel %vm240, 0, %v239
    %v242 = vsub.s32 32, %v241
    %v243 = vshll.u32 %v234, %v241
    %v244 = vshrl.u32 %v226, %v242
    %v245 = vor.u32 %v243, %v244
    %v246 = vsub.s32 4294967266, %v241
    %v247 = vadd.s32 %v246, 127
    %v248 = vshll.u32 %v247, 23
    %v249 = vor.u32 4788187, %v248
    %v250 = vand.u32 2147483647, %v249
    %v252 = vcvt.s32.f32 %v245
    %v253 = vmul.f32 %v252, %v250
    %v254 = vxor.u32 %v253, 2147483648
    %v255 = vsel %vm134, %v254, %v253
    %v256 = vsub.s32 4, %v232
    %v257 = vsel %vm134, %v256, %v232
    %v258 = vsel %vm133, %v130, %v255
    %v259 = vsel %vm133, 0, %v257
    %v260 = vmul.f32 %v258, %v258
    %v261 = vmul.f32 %v260, -0.001358992
    %v262 = vadd.f32 %v261, 0.041655596
    %v263 = vmul.f32 %v260, %v262
    %v264 = vadd.f32 %v263, -0.4999988
    %v265 = vmul.f32 %v260, %v264
    %v266 = vadd.f32 1.0, %v265
    %v267 = vmul.f32 %v258, %v258
    %v268 = vmul.f32 %v267, -0.00019511016
    %v269 = vadd.f32 %v268, 0.008332121
    %v270 = vmul.f32 %v267, %v269
    %v271 = vadd.f32 %v270, -0.16666654
    %v272 = vmul.f32 %v267, %v271
    %v273 = vadd.f32 %v272, 1.0
    %v274 = vmul.f32 %v273, %v258
    %vm275 = vweird.f32 %v130
    %v276 = vand.u32 %v259, 3
    %vm277 = vcmp.lt.s32.totalorder %v276, 2
    %vm278 = vcmp.eq.s32.totalorder %v276, 0
    %v279 = vxor.u32 %v274, 2147483648
    %v280 = vsel %vm278, %v266, %v279
    %vm281 = vcmp.eq.s32.totalorder %v276, 2
    %v282 = vxor.u32 %v266, 2147483648
    %v283 = vsel %vm281, %v282, %v274
    %v284 = vsel %vm277, %v280, %v283
    %v285 = vsel %vm275, nan, %v284
    %v286 = vand.u32 2147483647, %v131
    %vm287 = vcmp.le.f32.partialorder %v286, 0.7853982
    %vm288 = vcmp.lt.s32.totalorder %v131, 0
    %v289 = vand.u32 %v131, 2139095040
    %v290 = vshrl.u32 %v289, 23
    %v291 = vsub.s32 %v290, 127
    %v292 = vand.u32 2147483647, %v131
    %v293 = vand.u32 %v292, 8388607
    %v294 = vor.u32 %v293, 8388608
    %v295 = vsub.s32 0, %v294
    %v296 = vadd.s32 %v291, 1
    %vm297 = vcmp.gt.s32.totalorder %v296, 0
    %v298 = vsel %vm297, %v296, 0
    %v299 = vshrl.u32 %v298, 5
    %v300 = vand.u32 %v298, 31
    %v301 = vsub.s32 32, %v300
    %v302 = vshrl.u32 683565275, %v301
    %v303 = vshll.u32 683565275, %v300
    %v304 = vshrl.u32 2475754826, %v301
    %v305 = vor.u32 %v303, %v304
    %v306 = vshll.u32 2475754826, %v300
    %v307 = vshrl.u32 2131351028, %v301
    %v308 = vor.u32 %v306, %v307
    %v309 = vshll.u32 2131351028, %v300
    %v310 = vshrl.u32 2102212464, %v301
    %v311 = vor.u32 %v309, %v310
    %v312 = vshll.u32 2102212464, %v300
    %v313 = vshrl.u32 920167782, %v301
    %v314 = vor.u32 %v312, %v313
    %v315 = vshll.u32 920167782, %v300
    %v316 = vshrl.u32 1326507024, %v301
    %v317 = vor.u32 %v315, %v316
    %vm318 = vcmp.lt.s32.totalorder %v299, 1
    %vm319 = vcmp.lt.s32.totalorder %v299, 2
    %vm320 = vcmp.lt.s32.totalorder %v299, 3
    %vm321 = vcmp.lt.s32.totalorder %v299, 4
    %v322 = vsel %vm318, %v302, %v305
    %v323 = vsel %vm321, %v311, 2102212464
    %v324 = vsel %vm320, %v308, %v323
    %v325 = vsel %vm319, %v322, %v324
    %v326 = vsel %vm318, %v305, %v308
    %v327 = vsel %vm321, %v314, 920167782
    %v328 = vsel %vm320, %v311, %v327
    %v329 = vsel %vm319, %v326, %v328
    %v330 = vsel %vm318, %v308, %v311
    %v331 = vsel %vm321, %v317, 1326507024
    %v332 = vsel %vm320, %v314, %v331
    %v333 = vsel %vm319, %v330, %v332
    %v334 = vshll.u32 %v294, 8
    %v335 = vand.u32 %v334, 65535
    %v336 = vshrl.u32 %v334, 16
    %v337 = vand.u32 %v333, 65535
    %v338 = vshrl.u32 %v333, 16
    %v339 = vmul.u32 %v335, %v337
    %v340 = vmul.u32 %v335, %v338
    %v341 = vmul.u32 %v336, %v337
    %v342 = vmul.u32 %v336, %v338
    %v343 = vshll.u32 %v340, 16
    %v344 = vshrl.u32 %v340, 16
    %v345 = vshll.u32 %v341, 16
    %v346 = vshrl.u32 %v341, 16
    %vm347 = vc.u32 %v339, %v343
    %v348 = vsel %vm347, 1, 0
    %v349 = vadd.s32 %v339, %v343
    %v350 = vadd.s32 %v342, %v348
    %vm351 = vc.u32 %v349, %v345
    %v352 = vsel %vm351, 1, 0
    %v353 = vadd.s32 %v349, %v345
    %v354 = vadd.s32 %v350, %v352
    %v355 = vadd.s32 %v354, %v344
    %v356 = vadd.s32 %v355, %v346
    %v357 = vand.u32 %v334, 65535
    %v358 = vshrl.u32 %v334, 16
    %v359 = vand.u32 %v329, 65535
    %v360 = vshrl.u32 %v329, 16
    %v361 = vmul.u32 %v357, %v359
    %v362 = vmul.u32 %v357, %v360
    %v363 = vmul.u32 %v358, %v359
    %v364 = vmul.u32 %v358, %v360
    %v365 = vshll.u32 %v362, 16
    %v366 = vshrl.u32 %v362, 16
    %v367 = vshll.u32 %v363, 16
    %v368 = vshrl.u32 %v363, 16
    %vm369 = vc.u32 %v361, %v365
    %v370 = vsel %vm369, 1, 0
    %v371 = vadd.s32 %v361, %v365
    %v372 = vadd.s32 %v364, %v370
    %vm373 = vc.u32 %v371, %v367
    %v374 = vsel %vm373, 1, 0
    %v375 = vadd.s32 %v371, %v367
    %v376 = vadd.s32 %v372, %v374
    %v377 = vadd.s32 %v376, %v366
    %v378 = vadd.s32 %v377, %v368
    %v379 = vmul.u32 %v334, %v325
    %v380 = vadd.s32 %v356, %v375
    %vm381 = vc.u32 %v356, %v375
    %v382 = vadd.s32 %v378, 1
    %v383 = vsel %vm381, %v382, %v378
    %v384 = vadd.s32 %v379, %v383
    %v385 = vadd.s32 %v384, 536870912
    %v386 = vshrl.u32 %v385, 30
    %v387 = vshll.u32 %v386, 30
    %v388 = vsub.s32 %v384, %v387
    %vm389 = vcmp.lt.s32.totalorder %v388, 0
    %v390 = vsub.s32 0, %v388
    %v391 = vsel %vm389, %v390, %v388
    %v392 = vclz %v391
    %v393 = vsub.s32 %v392, 2
    %vm394 = vcmp.gt.s32.totalorder 0, %v393
    %v395 = vsel %vm394, 0, %v393
    %v396 = vsub.s32 32, %v395
    %v397 = vshll.u32 %v388, %v395
    %v398 = vshrl.u32 %v380, %v396
    %v399 = vor.u32 %v397, %v398
    %v400 = vsub.s32 4294967266, %v395
    %v401 = vadd.s32 %v400, 127
    %v402 = vshll.u32 %v401, 23
    %v403 = vor.u32 4788187, %v402
    %v404 = vand.u32 2147483647, %v403
    %v406 = vcvt.s32.f32 %v399
    %v407 = vmul.f32 %v406, %v404
    %v408 = vxor.u32 %v407, 2147483648
    %v409 = vsel %vm288, %v408, %v407
    %v410 = vsub.s32 4, %v386
    %v411 = vsel %vm288, %v410, %v386
    %v412 = vsel %vm287, %v131, %v409
    %v413 = vsel %vm287, 0, %v411
    %v414 = vmul.f32 %v412, %v412
    %v415 = vmul.f32 %v414, -0.001358992
    %v416 = vadd.f32 %v415, 0.041655596
    %v417 = vmul.f32 %v414, %v416
    %v418 = vadd.f32 %v417, -0.4999988
    %v419 = vmul.f32 %v414, %v418
    %v420 = vadd.f32 1.0, %v419
    %v421 = vmul.f32 %v412, %v412
    %v422 = vmul.f32 %v421, -0.00019511016
    %v423 = vadd.f32 %v422, 0.008332121
    %v424 = vmul.f32 %v421, %v423
    %v425 = vadd.f32 %v424, -0.16666654
    %v426 = vmul.f32 %v421, %v425
    %v427 = vadd.f32 %v426, 1.0
    %v428 = vmul.f32 %v427, %v412
    %vm429 = vweird.f32 %v131
    %v430 = vand.u32 %v413, 3
    %vm431 = vcmp.lt.s32.totalorder %v430, 2
    %vm432 = vcmp.eq.s32.totalorder %v430, 0
    %v433 = vxor.u32 %v428, 2147483648
    %v434 = vsel %vm432, %v420, %v433
    %vm435 = vcmp.eq.s32.totalorder %v430, 2
    %v436 = vxor.u32 %v420, 2147483648
    %v437 = vsel %vm435, %v436, %v428
    %v438 = vsel %vm431, %v434, %v437
    %v439 = vsel %vm429, nan, %v438
    %v440 = vmul.f32 %v128, %v285
    %v441 = vmul.f32 %v129, %v439
    %v442 = vld [vmem:[#allocation4] sm:$0xff]
    %v443 = vld [vmem:[#allocation4 + $0x8] sm:$0xff]
    %v444 = vadd.f32 %v442, %v440
    %v445 = vadd.f32 %v443, %v441
    %446 = vst [vmem:[#allocation7] sm:$0xff] %v444
    %447 = vst [vmem:[#allocation7 + $0x8] sm:$0xff] %v445
    // Predicated region
    $region10: #{tpu_custom_call.1} parent=1 // pred_check
      _
    $region11: #{tpu_custom_call.1} parent=1 // pred_check_branch
      %449 = sbr.rel (0) target = $region13
    $region12: #{tpu_custom_call.1} parent=1 // pred_region
      %451 = vsyncadd [#allocation6], 0
      %s452 = sshll.u32 [#allocation7], 4
      %s453 = int_to_ptr.vmem [resolvable:$true] %s452
      %s454 = sshll.u32 %s2, 4
      %s455 = int_to_ptr.hbm [resolvable:$true] %s454
      %460 = dma.vmem_to_hbm [thread:$0]  %s453, 256, %s455, [#allocation6], 128, 128, 8
    $region13: #{tpu_custom_call.1} parent=1 // pred_fallthru
      _
    // Predicated region
    $region14: #{tpu_custom_call.1} parent=1 // pred_check
      _
    $region15: #{tpu_custom_call.1} parent=1 // pred_check_branch
      %462 = sbr.rel (0) target = $region17
    $region16: #{tpu_custom_call.1} parent=1 // pred_region
      %464 = dma.done [#allocation6], 256
    $region17: #{tpu_custom_call.1} parent=1 // pred_fallthru
      _
    %465 = vsyncpa [#allocation5], 1
    %466 = vsyncpa [#allocation6], 1

</llo_original>
